<compile_context>
chip_gen: v6e
topology: v6e:2x2x1
jax: 0.10.0
libtpu: 0.0.40
codegen_flags: <defaults>
</compile_context>

<pallas_src>
import functools

import jax
import jax.numpy as jnp
from jax.experimental import pallas as pl
from jax.experimental.pallas import tpu as pltpu

_LANE = 128
_SUBLANE = 8
_NUM_CORE_SPLITS = 2          # leading "parallel" grid axis; uses both TCs on v7x
_MAX_TILE_L = 16 * 1024       # (24, 16384) f32 block = 1.5 MiB HBM per grid step


def _round_up(v: int, m: int) -> int:
    return (v + m - 1) // m * m


def _custom_loss_kernel(x_ref, o_ref, acc_ref):
    """x_ref:  (24, TILE_L) sublane-dense block; component c in rows [8c, 8c+8).
    o_ref:  (1, 8, 128) per-core partial-sum output block.
    acc_ref:(8, TILE_L) f32 accumulator, per-core, persists over the arbitrary axis."""
    i = pl.program_id(1)

    @pl.when(i == 0)
    def _init():
        acc_ref[...] = jnp.zeros_like(acc_ref)

    # Cast on dense vregs; DMA stays in the input dtype.
    x = x_ref[...].astype(jnp.float32)                       # (24, T)
    sq = x * x
    # Slices at sublane-group (vreg) boundaries — no cross-sublane shuffles.
    ssum = sq[0:8, :] + sq[8:16, :] + sq[16:24, :]           # (8, T)
    # Pad columns were filled with (1,0,0) -> norm == 1 -> contributes 0.
    acc_ref[...] += jnp.abs(jnp.sqrt(ssum) - 1.0)

    @pl.when(i == pl.num_programs(1) - 1)
    def _finalize():
        part = jnp.sum(acc_ref[...])                         # per-core scalar
        o_ref[...] = jnp.broadcast_to(part, o_ref.shape).astype(jnp.float32)


def custom_loss(output: jax.Array, *, max_tile_lanes: int = _MAX_TILE_L) -> jax.Array:
    """Pallas implementation of CustomLoss.forward.

    Args:
      output: (B, 21) array (any float dtype).
    Returns:
      scalar f32 loss.
    """
    assert output.ndim == 2 and output.shape[1] == 21, output.shape
    B = output.shape[0]
    total = B * 7
    splits = _NUM_CORE_SPLITS

    # Lane tile: a multiple of 128, no larger than needed for small inputs.
    tile_l = min(_round_up(max_tile_lanes, _LANE),
                 _round_up(pl.cdiv(total, splits * _SUBLANE), _LANE))
    chunk = _SUBLANE * tile_l                       # flat elements per grid step
    tiles_per_core = pl.cdiv(total, splits * chunk)
    padded = splits * tiles_per_core * chunk
    lanes = padded // _SUBLANE                      # = splits * tiles_per_core * tile_l

    # (B, 21) -> (3, B*7) component-major slab (layout plumbing done by XLA).
    x = output.reshape(B, 3, 7).transpose(1, 0, 2).reshape(3, total)
    pad = padded - total
    if pad:
        # Pad component 0 with 1.0 and components 1-2 with 0.0 so pad columns
        # have norm exactly 1 -> |norm - 1| == 0 -> no in-kernel masking needed.
        pad_blk = jnp.concatenate(
            [jnp.ones((1, pad), x.dtype), jnp.zeros((2, pad), x.dtype)], axis=0)
        x = jnp.concatenate([x, pad_blk], axis=1)
    # Pure row-major reshape (no data movement): (3, padded) -> (24, lanes);
    # component c lands in sublane rows [8c, 8c+8).
    x = x.reshape(3 * _SUBLANE, lanes)

    cost = pl.CostEstimate(
        flops=8 * total,
        transcendentals=total,
        bytes_accessed=int(x.size * x.dtype.itemsize) + splits * 8 * 128 * 4,
    )

    partials = pl.pallas_call(
        _custom_loss_kernel,
        out_shape=jax.ShapeDtypeStruct((splits, 8, 128), jnp.float32),
        grid_spec=pltpu.PrefetchScalarGridSpec(
            num_scalar_prefetch=0,
            grid=(splits, tiles_per_core),
            in_specs=[pl.BlockSpec(
                (3 * _SUBLANE, tile_l),
                lambda c, i: (0, c * tiles_per_core + i))],
            out_specs=pl.BlockSpec((1, 8, 128), lambda c, i: (c, 0, 0)),
            scratch_shapes=[pltpu.VMEM((_SUBLANE, tile_l), jnp.float32)],
        ),
        compiler_params=pltpu.CompilerParams(
            dimension_semantics=("parallel", "arbitrary"),
        ),
        cost_estimate=cost,
    )(x)

    # Sum the per-core partials and normalize by the *unpadded* count.
    return jnp.sum(partials[:, 0, 0]) * jnp.float32(1.0 / total)


def custom_loss_ref(output: jax.Array) -> jax.Array:
    """Pure-JAX reference mirroring the PyTorch module."""
    x = output.reshape(output.shape[0], 3, 7).astype(jnp.float32)
    norms = jnp.linalg.norm(x, axis=1)
    return jnp.mean(jnp.abs(norms - 1.0))


if __name__ == "__main__":
    key = jax.random.PRNGKey(0)

    # Small shape consistent with the module: batch=8, features=3*7.
    B = 8
    output = jax.random.normal(key, (B, 21), dtype=jnp.float32)
    loss = custom_loss(output)
    jax.block_until_ready(loss)
    ref = custom_loss_ref(output)
    assert jnp.allclose(loss, ref, rtol=1e-5, atol=1e-5), (loss, ref)

    # Second check: multi-tile accumulation per core + padded remainder columns.
    B2 = 300  # total = 2100 -> tile_l=128, 2 tiles/core, 1996 pad columns
    output2 = jax.random.normal(jax.random.PRNGKey(0), (B2, 21), dtype=jnp.float32)
    loss2 = custom_loss(output2, max_tile_lanes=128)
    jax.block_until_ready(loss2)
    ref2 = custom_loss_ref(output2)
    assert jnp.allclose(loss2, ref2, rtol=1e-5, atol=1e-5), (loss2, ref2)

    print("KERNEL_OK")
</pallas_src>

<mosaic_0001>
module attributes {stable_mosaic.version = 11 : i64} {
  func.func @_custom_loss_kernel(%arg0: i32, %arg1: i32, %arg2: memref<24x128xf32, #tpu.memory_space<vmem>>, %arg3: memref<1x8x128xf32, #tpu.memory_space<vmem>>, %arg4: memref<8x128xf32, #tpu.memory_space<vmem>>) attributes {dimension_semantics = [#tpu.dimension_semantics<parallel>, #tpu.dimension_semantics<arbitrary>], iteration_bounds = array<i64: 2, 1>, scalar_prefetch = 0 : i64, scratch_operands = 1 : i64, tpu.core_type = #tpu.core_type<tc>, window_params = [{transform_indices = @transform_0, window_bounds = array<i64: 24, 128>}, {transform_indices = @transform_1, window_bounds = array<i64: 1, 8, 128>}]} {
    %c0_i32 = arith.constant 0 : i32
    %0 = arith.cmpi eq, %arg1, %c0_i32 : i32
    %1 = arith.extui %0 : i1 to i32
    %c0_i32_0 = arith.constant 0 : i32
    %2 = arith.cmpi ne, %1, %c0_i32_0 : i32
    scf.if %2 {
      %cst_8 = arith.constant 0.000000e+00 : f32
      %20 = vector.broadcast %cst_8 : f32 to vector<8x128xf32>
      %c0_9 = arith.constant 0 : index
      %c0_10 = arith.constant 0 : index
      %21 = vector.load %arg4[%c0_9, %c0_10] : memref<8x128xf32, #tpu.memory_space<vmem>>, vector<8x128xf32>
      tpu.vector_store %arg4[%c0_9, %c0_10], %20 {strides = array<i32>} : memref<8x128xf32, #tpu.memory_space<vmem>>, vector<8x128xf32>,
    } else {
    }
    %c0 = arith.constant 0 : index
    %c0_1 = arith.constant 0 : index
    %3 = vector.load %arg2[%c0, %c0_1] : memref<24x128xf32, #tpu.memory_space<vmem>>, vector<24x128xf32>
    %4 = arith.mulf %3, %3 : vector<24x128xf32>
    %5 = vector.extract_strided_slice %4 {offsets = [0, 0], sizes = [8, 128], strides = [1, 1]} : vector<24x128xf32> to vector<8x128xf32>
    %6 = vector.extract_strided_slice %4 {offsets = [8, 0], sizes = [8, 128], strides = [1, 1]} : vector<24x128xf32> to vector<8x128xf32>
    %7 = arith.addf %5, %6 : vector<8x128xf32>
    %8 = vector.extract_strided_slice %4 {offsets = [16, 0], sizes = [8, 128], strides = [1, 1]} : vector<24x128xf32> to vector<8x128xf32>
    %9 = arith.addf %7, %8 : vector<8x128xf32>
    %c0_2 = arith.constant 0 : index
    %c0_3 = arith.constant 0 : index
    %10 = vector.load %arg4[%c0_2, %c0_3] : memref<8x128xf32, #tpu.memory_space<vmem>>, vector<8x128xf32>
    %11 = math.sqrt %9 : vector<8x128xf32>
    %cst = arith.constant 1.000000e+00 : f32
    %12 = vector.broadcast %cst : f32 to vector<8x128xf32>
    %13 = arith.subf %11, %12 : vector<8x128xf32>
    %14 = math.absf %13 : vector<8x128xf32>
    %15 = arith.addf %10, %14 : vector<8x128xf32>
    %c0_4 = arith.constant 0 : index
    %c0_5 = arith.constant 0 : index
    %16 = vector.load %arg4[%c0_4, %c0_5] : memref<8x128xf32, #tpu.memory_space<vmem>>, vector<8x128xf32>
    tpu.vector_store %arg4[%c0_4, %c0_5], %15 {strides = array<i32>} : memref<8x128xf32, #tpu.memory_space<vmem>>, vector<8x128xf32>,
    %c0_i32_6 = arith.constant 0 : i32
    %17 = arith.cmpi eq, %arg1, %c0_i32_6 : i32
    %18 = arith.extui %17 : i1 to i32
    %c0_i32_7 = arith.constant 0 : i32
    %19 = arith.cmpi ne, %18, %c0_i32_7 : i32
    scf.if %19 {
      %c0_8 = arith.constant 0 : index
      %c0_9 = arith.constant 0 : index
      %20 = vector.load %arg4[%c0_8, %c0_9] : memref<8x128xf32, #tpu.memory_space<vmem>>, vector<8x128xf32>
      %21 = vector.shape_cast %20 : vector<8x128xf32> to vector<1x8x128xf32>
      %cst_10 = arith.constant dense<0.000000e+00> : vector<1xf32>
      %22 = vector.multi_reduction <add>, %21, %cst_10 [1, 2] : vector<1x8x128xf32> to vector<1xf32>
      %23 = vector.shape_cast %22 : vector<1xf32> to vector<1x1x1xf32>
      %24 = vector.extract %23[0, 0, 0] : f32 from vector<1x1x1xf32>
      %25 = vector.broadcast %24 : f32 to vector<1x8x128xf32>
      %c0_11 = arith.constant 0 : index
      %c0_12 = arith.constant 0 : index
      %c0_13 = arith.constant 0 : index
      %26 = vector.load %arg3[%c0_11, %c0_12, %c0_13] : memref<1x8x128xf32, #tpu.memory_space<vmem>>, vector<1x8x128xf32>
      tpu.vector_store %arg3[%c0_11, %c0_12, %c0_13], %25 {strides = array<i32>} : memref<1x8x128xf32, #tpu.memory_space<vmem>>, vector<1x8x128xf32>,
    } else {
    }
    return
  }
  func.func @transform_0(%arg0: i32, %arg1: i32) -> (i32, i32) {
    %c1_i32 = arith.constant 1 : i32
    %0 = arith.muli %arg0, %c1_i32 : i32
    %1 = arith.addi %0, %arg1 : i32
    %c0_i32 = arith.constant 0 : i32
    %c0_i32_0 = arith.constant 0 : i32
    return %c0_i32, %1 : i32, i32
  }
  func.func @transform_1(%arg0: i32, %arg1: i32) -> (i32, i32, i32) {
    %c0_i32 = arith.constant 0 : i32
    %c0_i32_0 = arith.constant 0 : i32
    %c0_i32_1 = arith.constant 0 : i32
    return %arg0, %c0_i32, %c0_i32_0 : i32, i32, i32
  }
}

</mosaic_0001>

<llo_original>
// kernel: tpu_custom_call.1
$region0: #{tpu_custom_call.1}
  #allocation0 [shape = 'u32[]', space=smem, size = 0x4, offset = 0x4, fixed_abs, tag = 'smem constant byte address 0x4 - core index']
  #allocation1 [shape = 'u32[144,128]{1,0:T(1,128)}', space=vmem, size = 0x12000, scoped, tag = 'internal scratch']
  #allocation2 [shape = 'f32[8,128]{1,0:T(8,128)}', space=vmem, size = 0x1000, scoped, tag = 'scratch operand']
  %s0 = inlined_call_operand.hbm [shape: f32[24,256], index: 0, kind: input, shape index: {}]
  %s1 = inlined_call_operand.hbm [shape: f32[2,8,128], index: 1, kind: output, shape index: {}]
  %s2 = sld [smem:[#allocation0]]
  $region49: #{tpu_custom_call.1} parent=0
    _
  %s4 = ssub.s32 1, %s2
  %s5 = scalar_select 0, %s4, %s2
  $region1: #{tpu_custom_call.1} parent=0
    #allocation3 [shape = 'u8[24576]{0}', space=vmem, size = 0x6000, scoped, tag = 'input window, operand 0']
    #allocation4 [shape = 's32[2]{0}', space=sflag, size = 0x8, scoped, tag = 'scoped memory for tpu_custom_call.1']
    #allocation5 [shape = 's32[2]{0}', space=sflag, size = 0x8, scoped, tag = 'scoped memory for tpu_custom_call.1']
    #allocation6 [shape = 'u8[8192]{0}', space=vmem, size = 0x2000, scoped, tag = 'output window, operand 0']
    %6 = vsyncpa [#allocation4], 0
    %s7 = scalar_lea.sflag [#allocation4], 1
    %8 = vsyncpa %s7, 0
    %9 = vsyncpa [#allocation5], 0
    %s10 = scalar_lea.sflag [#allocation5], 1
    %11 = vsyncpa %s10, 0
    loop: start=0, step=1, limit=4
    $region2: #{tpu_custom_call.1} parent=1 // loop_pre_header
      _
    $region3: #{tpu_custom_call.1} parent=1 // loop_header
      %s13 = sphi 0, %s17
      %p14 = scmp.ge.s32.totalorder %s13, 4
      %s20 = sphi 0, %s32
      %s21 = sphi 0, %s28
      %s22 = sphi 0, %s20
      %s23 = sphi 0, %s21
      %s24 = sphi 0, %s22
      %s25 = sphi 0, %s23
      %s37 = sphi 0, %s39
      %s40 = sphi 0, %s37
      %s41 = sphi 0, %s40
      %s57 = sphi 0, %s41
      %s63 = sphi 0, %s65
      %s66 = sphi 0, %s63
      %s67 = sphi 0, %s66
      %s83 = sphi 0, %s67
    $region4: #{tpu_custom_call.1} parent=1 // loop_header_branch
      %16 = sbr.rel (%p14) target = $region8
    $region5: #{tpu_custom_call.1} parent=1 // loop_body
      %s18 = ssub.s32 %s13, 1
      %s19 = ssub.s32 %s13, 2
      %s26 = sadd.s32 1, %s21
      %p27 = scmp.ge.s32.totalorder %s26, 1
      %s28 = scalar_select %p27, 0, %s26
      %s29 = sadd.s32 1, %s20
      %s30 = scalar_select %p27, %s29, %s20
      %p31 = scmp.ge.s32.totalorder %s30, 2
      %s32 = scalar_select %p31, 0, %s30
      %s33 = sadd.s32 %s20, %s21
      %s34 = sadd.s32 %s32, %s28
      %s35 = ssub.s32 %s33, %s34
      %p36 = scmp.eq.s32.totalorder %s35, 0
      %s38 = sadd.s32 %s37, 1
      %s39 = scalar_select %p36, %s37, %s38
      %p42 = pneg %p36
      %p43 = scmp.eq.s32.totalorder %s13, 1
      %p44 = por %p42, %p43
      %p45 = scmp.ne.s32.totalorder %s37, %s40
      %p46 = scmp.eq.s32.totalorder %s13, 0
      %p47 = por %p45, %p46
      %p48 = scmp.ne.s32.totalorder %s37, %s40
      %p49 = scmp.eq.s32.totalorder %s18, 1
      %p50 = por %p48, %p49
      %p51 = scmp.ne.s32.totalorder %s40, %s41
      %p52 = scmp.eq.s32.totalorder %s18, 0
      %p53 = por %p51, %p52
      %p54 = scmp.ne.s32.totalorder %s40, %s41
      %p55 = scmp.eq.s32.totalorder %s19, 1
      %p56 = por %p54, %p55
      %p58 = scmp.ne.s32.totalorder %s41, %s57
      %p59 = scmp.eq.s32.totalorder %s19, 0
      %p60 = por %p58, %p59
      %s61 = ssub.s32 %s20, %s32
      %p62 = scmp.eq.s32.totalorder %s61, 0
      %s64 = sadd.s32 %s63, 1
      %s65 = scalar_select %p62, %s63, %s64
      %p68 = pneg %p62
      %p69 = scmp.eq.s32.totalorder %s13, 1
      %p70 = por %p68, %p69
      %p71 = scmp.ne.s32.totalorder %s63, %s66
      %p72 = scmp.eq.s32.totalorder %s13, 0
      %p73 = por %p71, %p72
      %p74 = scmp.ne.s32.totalorder %s63, %s66
      %p75 = scmp.eq.s32.totalorder %s18, 1
      %p76 = por %p74, %p75
      %p77 = scmp.ne.s32.totalorder %s66, %s67
      %p78 = scmp.eq.s32.totalorder %s18, 0
      %p79 = por %p77, %p78
      %p80 = scmp.ne.s32.totalorder %s66, %s67
      %p81 = scmp.eq.s32.totalorder %s19, 1
      %p82 = por %p80, %p81
      %p84 = scmp.ne.s32.totalorder %s67, %s83
      %p85 = scmp.eq.s32.totalorder %s19, 0
      %p86 = por %p84, %p85
      %p87 = scmp.le.s32.totalorder 1, %s13
      %p88 = scmp.lt.s32.totalorder %s13, 3
      %p89 = pnand %p87, %p88
      %p90 = pneg %p89
      // Predicated region
      $region9: #{tpu_custom_call.1} parent=5 // pred_check
        _
      $region10: #{tpu_custom_call.1} parent=5 // pred_check_branch
        %92 = sbr.rel (%p89) target = $region12
      $region11: #{tpu_custom_call.1} parent=5 // pred_region
        %s93 = ssub.s32 %s13, 1
      $region12: #{tpu_custom_call.1} parent=5 // pred_fallthru
        _
      %p94 = scmp.lt.s32.totalorder %s13, 2
      // Predicated region
      $region13: #{tpu_custom_call.1} parent=5 // pred_check
        %p95 = pneg %p94
      $region14: #{tpu_custom_call.1} parent=5 // pred_check_branch
        %97 = sbr.rel (%p95) target = $region16
      $region15: #{tpu_custom_call.1} parent=5 // pred_region
        // Predicated region
        $region17: #{tpu_custom_call.1} parent=15 // pred_check
          %p98 = pneg %p47
        $region18: #{tpu_custom_call.1} parent=15 // pred_check_branch
          %100 = sbr.rel (%p98) target = $region20
        $region19: #{tpu_custom_call.1} parent=15 // pred_region
          %s101 = sand.u32 %s37, 1
          %s102 = scalar_lea.sflag [#allocation4], %s101
          %s103 = sand.u32 %s37, 1
          %s104 = smul.addr %s103, 24
          %s105 = scalar_lea.vmem [#allocation3], %s104
          %s106 = sadd.s32 %s20, %s21
          %s108 = ssub.s32 384, 384
          %109 = vsyncadd %s102, %s108
          %s110 = smul.addr %s106, 128
          %s111 = scalar_lea.hbm %s0, %s110
          %s112 = sshll.u32 %s105, 4
          %s113 = int_to_ptr.vmem [resolvable:$true] %s112
          %118 = dma.hbm_to_vmem [thread:$0]  %s111, 384, %s113, %s102, 256, 128, 8
        $region20: #{tpu_custom_call.1} parent=15 // pred_fallthru
          _
      $region16: #{tpu_custom_call.1} parent=5 // pred_fallthru
        _
      %p119 = scmp.le.s32.totalorder 1, %s13
      %p120 = scmp.lt.s32.totalorder %s13, 3
      %p121 = pnand %p119, %p120
      %p122 = pneg %p121
      // Predicated region
      $region21: #{tpu_custom_call.1} parent=5 // pred_check
        _
      $region22: #{tpu_custom_call.1} parent=5 // pred_check_branch
        %124 = sbr.rel (%p121) target = $region24
      $region23: #{tpu_custom_call.1} parent=5 // pred_region
        %s125 = ssub.s32 %s13, 1
        %s126 = sand.u32 %s40, 1
        %s127 = scalar_lea.sflag [#allocation4], %s126
        %s128 = sand.u32 %s40, 1
        %s129 = smul.addr %s128, 24
        %s130 = scalar_lea.vmem [#allocation3], %s129
        // Predicated region
        $region25: #{tpu_custom_call.1} parent=23 // pred_check
          %p131 = pneg %p53
        $region26: #{tpu_custom_call.1} parent=23 // pred_check_branch
          %133 = sbr.rel (%p131) target = $region28
        $region27: #{tpu_custom_call.1} parent=23 // pred_region
          %134 = dma.done %s127, 384
        $region28: #{tpu_custom_call.1} parent=23 // pred_fallthru
          _
        %s135 = sand.u32 %s40, 1
        %s136 = scalar_lea.sflag [#allocation4], %s135
        %s137 = sand.u32 %s40, 1
        %s138 = smul.addr %s137, 24
        %s139 = scalar_lea.vmem [#allocation3], %s138
        %p140 = pneg %p53
        %p141 = pneg %p50
        %p142 = pneg %p79
        %p143 = pneg %p76
        %s144 = sand.u32 %s66, 1
        %s145 = scalar_lea.sflag [#allocation5], %s144
        %s146 = sand.u32 %s66, 1
        %s147 = smul.addr %s146, 8
        %s148 = scalar_lea.vmem [#allocation6], %s147
        %s149 = sadd.s32 %s22, %s23
        %p150 = scmp.eq.s32.totalorder %s23, 0
        // Predicated region
        $region29: #{tpu_custom_call.1} parent=23 // pred_check
          %p151 = pneg %p150
        $region30: #{tpu_custom_call.1} parent=23 // pred_check_branch
          %153 = sbr.rel (%p151) target = $region32
        $region31: #{tpu_custom_call.1} parent=23 // pred_region
          %154 = vst [vmem:[#allocation2] sm:$0xff] 0.0
        $region32: #{tpu_custom_call.1} parent=23 // pred_fallthru
          _
        %v155 = vld [vmem:[%s130] sm:$0xff]
        %v156 = vld [vmem:[%s130 + $0x8] sm:$0xff]
        %v157 = vld [vmem:[%s130 + $0x10] sm:$0xff]
        %v158 = vmul.f32 %v155, %v155
        %v159 = vmul.f32 %v156, %v156
        %v160 = vmul.f32 %v157, %v157
        %v161 = vadd.f32 %v158, %v159
        %v162 = vadd.f32 %v161, %v160
        %v163 = vld [vmem:[#allocation2] sm:$0xff]
        %v164 = vrsqrt.pop %v162
        %v165 = vmul.f32 %v162, %v164
        %vm166 = vcmp.eq.f32.partialorder %v162, inf
        %v167 = vsel %vm166, %v162, %v165
        %vm168 = vcmp.eq.f32.partialorder %v162, 0.0
        %v169 = vand.u32 %v162, 2147483648
        %v170 = vsel %vm168, %v169, %v167
        %v171 = vsub.f32 %v170, 1.0
        %v172 = vand.u32 2147483647, %v171
        %v173 = vadd.f32 %v163, %v172
        %174 = vst [vmem:[#allocation2] sm:$0xff] %v173
        // Predicated region
        $region33: #{tpu_custom_call.1} parent=23 // pred_check
          %p175 = pneg %p150
        $region34: #{tpu_custom_call.1} parent=23 // pred_check_branch
          %177 = sbr.rel (%p175) target = $region36
        $region35: #{tpu_custom_call.1} parent=23 // pred_region
          %v178 = vld [vmem:[#allocation2] sm:$0xff]
          %179 = vadd.xlane.f32.xlu0 %v178
          %v180 = vpop.xlane.xlu0 %179
          %v181 = vrot.slane %v180, 4
          %v182 = vadd.f32 %v180, %v181
          %v183 = vrot.slane %v182, 2
          %v184 = vadd.f32 %v182, %v183
          %v185 = vrot.slane %v184, 1
          %v186 = vadd.f32 %v184, %v185
          %s187 = vtos %v186
          %v188 = vstv %s187
          %189 = vst [vmem:[%s148] sm:$0xff] %v188
        $region36: #{tpu_custom_call.1} parent=23 // pred_fallthru
          _
        %s190 = sand.u32 %s66, 1
        %s191 = scalar_lea.sflag [#allocation5], %s190
        %s192 = sand.u32 %s66, 1
        %s193 = smul.addr %s192, 8
        %s194 = scalar_lea.vmem [#allocation6], %s193
        // Predicated region
        $region37: #{tpu_custom_call.1} parent=23 // pred_check
          %p195 = pneg %p76
        $region38: #{tpu_custom_call.1} parent=23 // pred_check_branch
          %197 = sbr.rel (%p195) target = $region40
        $region39: #{tpu_custom_call.1} parent=23 // pred_region
          %s199 = ssub.s32 128, 128
          %200 = vsyncadd %s191, %s199
          %s201 = smul.addr %s22, 128
          %s202 = scalar_lea.hbm %s1, %s201
          %s204 = sshll.u32 %s194, 4
          %s205 = int_to_ptr.vmem [resolvable:$true] %s204
          %207 = dma.vmem_to_hbm [thread:$0]  %s205, 128, %s202, %s191
        $region40: #{tpu_custom_call.1} parent=23 // pred_fallthru
          _
      $region24: #{tpu_custom_call.1} parent=5 // pred_fallthru
        _
      %p208 = scmp.le.s32.totalorder 2, %s13
      // Predicated region
      $region41: #{tpu_custom_call.1} parent=5 // pred_check
        %p209 = pneg %p208
      $region42: #{tpu_custom_call.1} parent=5 // pred_check_branch
        %211 = sbr.rel (%p209) target = $region44
      $region43: #{tpu_custom_call.1} parent=5 // pred_region
        %s212 = ssub.s32 %s13, 2
        // Predicated region
        $region45: #{tpu_custom_call.1} parent=43 // pred_check
          %p213 = pneg %p82
        $region46: #{tpu_custom_call.1} parent=43 // pred_check_branch
          %215 = sbr.rel (%p213) target = $region48
        $region47: #{tpu_custom_call.1} parent=43 // pred_region
          %s216 = sand.u32 %s67, 1
          %s217 = scalar_lea.sflag [#allocation5], %s216
          %s218 = sand.u32 %s67, 1
          %s219 = smul.addr %s218, 8
          %s220 = scalar_lea.vmem [#allocation6], %s219
          %221 = dma.done %s217, 128
        $region48: #{tpu_custom_call.1} parent=43 // pred_fallthru
          _
      $region44: #{tpu_custom_call.1} parent=5 // pred_fallthru
        _
    $region6: #{tpu_custom_call.1} parent=1 // loop_footer
      %s17 = sadd.s32 1, %s13
    $region7: #{tpu_custom_call.1} parent=1 // loop_footer_branch
      %12 = sbr.rel target = $region3
    $region8: #{tpu_custom_call.1} parent=1 // loop_exit
      _
    %222 = vsyncpa [#allocation4], 1
    %s223 = scalar_lea.sflag [#allocation4], 1
    %224 = vsyncpa %s223, 1
    %225 = vsyncpa [#allocation5], 1
    %s226 = scalar_lea.sflag [#allocation5], 1
    %227 = vsyncpa %s226, 1

</llo_original>
